<compile_context>
chip_gen: v7x
topology: tpu7x:2x2x1
jax: 0.10.0
libtpu: 0.0.40
codegen_flags: <defaults>
</compile_context>

<pallas_src>
import functools

import jax
import jax.numpy as jnp
import numpy as np
from jax.experimental import pallas as pl
from jax.experimental.pallas import tpu as pltpu


# ----------------------------- helpers ------------------------------------- #

def _round_up(n, m):
    return ((n + m - 1) // m) * m


def _block_multiple_of(n, cap, step=8):
    """Largest b <= cap with b % step == 0 and n % b == 0 (n itself if n <= cap)."""
    if n <= cap:
        return n
    best = step
    for d in range(step, cap + 1, step):
        if n % d == 0:
            best = d
    return best


def _pick_batch_tile(Bp, cap, min_tiles):
    """Batch tile: multiple of 8 that divides Bp.  min_tiles >= 2 keeps at
    least two tiles on the 'parallel' grid axis whenever Bp >= 8*min_tiles so
    v7x's two TensorCores both get work."""
    if min_tiles > 1 and Bp >= 8 * min_tiles:
        cap = min(cap, Bp // min_tiles)
    cap = max(8, cap)
    return _block_multiple_of(Bp, cap=cap, step=8)


# ------------------------------ kernel ------------------------------------- #

def _rnn_fused_kernel(x_ref, wih_t_ref, whh_t_ref, bias_ref, h0_ref,
                      out_ref, h_scr, p_scr):
    """One grid step == one (batch tile, time chunk).

    Top: batched input projection for the whole chunk (one big MXU matmul)
         P = x_chunk @ W_ih^T + (b_ih + b_hh)  -> f32 VMEM scratch.
    Bottom: serial recurrence over the chunk, unrolled:
         h_t = relu(P[t] + h_{t-1} @ W_hh^T), hidden carried in VMEM scratch.
    Grid axis 0 = batch tile ("parallel"), axis 1 = time chunk ("arbitrary").
    """
    c = pl.program_id(1)                       # time-chunk index

    @pl.when(c == 0)
    def _():
        h_scr[...] = h0_ref[...]               # initial hidden state, f32

    t_chunk, tb, dp = x_ref.shape
    hp = out_ref.shape[-1]

    # --- fused input projection for all t_chunk steps at once (MXU). ---
    # x is already in matmul_dtype (cast in the wrapper, so the DMA moved
    # bf16 on the bf16 path).  Merge (t_chunk, tb) -> rows: tb % 8 == 0, so
    # the reshape is sublane-aligned (free).
    x2d = x_ref[...].reshape(t_chunk * tb, dp)
    p_scr[...] = (
        jnp.dot(x2d, wih_t_ref[...], preferred_element_type=jnp.float32)
        + bias_ref[...]
    ).reshape(t_chunk, tb, hp)

    # --- serial recurrence (small per-step matmul), fully unrolled. ---
    def step(i, h):
        # Read W_hh^T through the ref each step instead of hoisting a value
        # live across the whole unrolled loop (avoids vreg spills at large H).
        pre = p_scr[i] + jnp.dot(h.astype(whh_t_ref.dtype), whh_t_ref[...],
                                 preferred_element_type=jnp.float32)
        h_new = jnp.maximum(pre, 0.0)           # relu, f32
        out_ref[i] = h_new.astype(out_ref.dtype)  # lane-dense (Hp = 128k) store
        return h_new

    h_last = jax.lax.fori_loop(0, t_chunk, step, h_scr[...], unroll=True)
    h_scr[...] = h_last


# ----------------------------- wrappers ------------------------------------ #

def rnn_layer_pallas(x_tm, w_ih, w_hh, b_ih, b_hh, h0, *,
                     matmul_dtype=jnp.bfloat16,
                     time_block_cap=32, batch_block_cap=256, min_batch_tiles=2):
    """x_tm: (S, B, D) time-major input; h0: (B, H). Returns out_tm (S, B, H)."""
    S, B, D = x_tm.shape
    H = w_hh.shape[0]
    out_dtype = x_tm.dtype

    Bp = _round_up(B, 8)
    Dp = _round_up(D, 128)
    Hp = _round_up(H, 128)

    t_chunk = min(S, time_block_cap)
    Sp = _round_up(S, t_chunk)                 # pad S to whole time chunks
    tb = _pick_batch_tile(Bp, batch_block_cap, min_batch_tiles)

    # Zero-pad to sublane/lane multiples + padded time steps (exact for a relu
    # RNN: padded units stay 0; padded-time outputs are discarded below).
    # x is cast to matmul_dtype here so its HBM->VMEM DMA moves bf16 bytes on
    # the bf16 path.
    x_p = jnp.pad(x_tm, ((0, Sp - S), (0, Bp - B), (0, Dp - D))).astype(matmul_dtype)
    wih_t = jnp.pad(jnp.transpose(w_ih), ((0, Dp - D), (0, Hp - H))).astype(matmul_dtype)
    whh_t = jnp.pad(jnp.transpose(w_hh), ((0, Hp - H), (0, Hp - H))).astype(matmul_dtype)
    bias = jnp.pad(b_ih + b_hh, (0, Hp - H)).reshape(1, Hp).astype(jnp.float32)
    h0_p = jnp.pad(h0, ((0, Bp - B), (0, Hp - H))).astype(jnp.float32)

    # Explicit VMEM budget (review: v5e 16 MiB / v6e-v7x 32 MiB scoped defaults).
    md_b = jnp.dtype(matmul_dtype).itemsize
    io_b = jnp.dtype(out_dtype).itemsize
    vmem_est = (2 * t_chunk * tb * Dp * md_b          # x chunk, double-buffered
                + 2 * t_chunk * tb * Hp * io_b        # out chunk, double-buffered
                + (Dp * Hp + Hp * Hp + Hp) * md_b     # resident weights+bias (x1)
                + 2 * tb * Hp * 4                     # h0 tile
                + tb * Hp * 4                         # h carry scratch
                + t_chunk * tb * Hp * 4)              # P chunk scratch
    vmem_limit = min(max(int(1.3 * vmem_est) + (2 << 20), 32 << 20), 100 << 20)

    # Constant-index resident blocks: single-buffered (halves their VMEM).
    resident = functools.partial(pl.BlockSpec, pipeline_mode=pl.Buffered(1))

    # TODO(synk): for very large D/H (e.g. 4096), additionally tile the Dp/Hp
    # axes of the resident weights (with an accumulator) to stay inside v7x's
    # 64 MiB VMEM; unnecessary at these sizes.
    out_p = pl.pallas_call(
        _rnn_fused_kernel,
        out_shape=jax.ShapeDtypeStruct((Sp, Bp, Hp), out_dtype),
        grid_spec=pltpu.PrefetchScalarGridSpec(
            num_scalar_prefetch=0,
            grid=(Bp // tb, Sp // t_chunk),
            in_specs=[
                pl.BlockSpec((t_chunk, tb, Dp), lambda b, c: (c, b, 0)),  # x chunk
                resident((Dp, Hp), lambda b, c: (0, 0)),                  # W_ih^T
                resident((Hp, Hp), lambda b, c: (0, 0)),                  # W_hh^T
                resident((1, Hp), lambda b, c: (0, 0)),                   # bias
                pl.BlockSpec((tb, Hp), lambda b, c: (b, 0)),              # h0 tile
            ],
            out_specs=pl.BlockSpec((t_chunk, tb, Hp), lambda b, c: (c, b, 0)),
            scratch_shapes=[pltpu.VMEM((tb, Hp), jnp.float32),            # h carry
                            pltpu.VMEM((t_chunk, tb, Hp), jnp.float32)],  # P chunk
        ),
        compiler_params=pltpu.CompilerParams(
            dimension_semantics=("parallel", "arbitrary"),
            vmem_limit_bytes=vmem_limit),
    )(x_p, wih_t, whh_t, bias, h0_p)

    # Discard padded batch/hidden/time-step rows (padded-time outputs are
    # garbage-but-finite and must not be used).
    return out_p[:S, :B, :H]


@functools.partial(jax.jit, static_argnames=("matmul_dtype",))
def rnn_forward(params, data, last_hidden, *, matmul_dtype=jnp.bfloat16):
    """Mirrors RNN.forward(data, last_hidden).

    data:        (B, S, D) batch_first input
    last_hidden: (1, B, H) initial hidden state
    returns (out, hidden_current) with shapes (B, S, H) and (1, B, H).
    """
    # `last_hidden = data + last_hidden` from the PyTorch module (broadcast add;
    # well defined here because S == B and D == H).
    combined = data + last_hidden
    # TODO(synk): the original module passes this (B, S, H) tensor straight to
    # nn.RNN as h0, which PyTorch rejects; we take the first batch slice as the
    # (B, H) initial hidden state of the single layer.
    h0 = combined[0]

    x_tm = jnp.transpose(data, (1, 0, 2))              # (S, B, D) time-major
    out_tm = rnn_layer_pallas(x_tm, params["w_ih"], params["w_hh"],
                              params["b_ih"], params["b_hh"], h0,
                              matmul_dtype=matmul_dtype)
    out = jnp.transpose(out_tm, (1, 0, 2))             # (B, S, H)
    hidden_current = out_tm[-1][None, :, :]            # step S-1 (valid steps only)
    return out, hidden_current


def rnn_forward_ref(params, data, last_hidden, matmul_dtype=jnp.float32):
    """Pure-JAX reference with the same numerics (MXU operands in matmul_dtype,
    f32 accumulation / hidden state)."""
    combined = data + last_hidden
    h0 = combined[0]
    x_tm = jnp.transpose(data, (1, 0, 2))
    md = matmul_dtype
    wih_t = jnp.transpose(params["w_ih"]).astype(md)
    whh_t = jnp.transpose(params["w_hh"]).astype(md)
    bias = (params["b_ih"] + params["b_hh"]).astype(jnp.float32)

    def step(h, x_t):
        pre = (jnp.dot(x_t.astype(md), wih_t, preferred_element_type=jnp.float32)
               + bias
               + jnp.dot(h.astype(md), whh_t, preferred_element_type=jnp.float32))
        h_new = jnp.maximum(pre, 0.0)
        return h_new, h_new

    h_n, out_tm = jax.lax.scan(step, h0.astype(jnp.float32), x_tm)
    return jnp.transpose(out_tm, (1, 0, 2)), h_n[None, :, :]


def init_params(key, input_dim, hidden_dim):
    """nn.RNN default init: U(-1/sqrt(H), 1/sqrt(H)) for all weights/biases."""
    k = 1.0 / np.sqrt(hidden_dim)
    k1, k2, k3, k4 = jax.random.split(key, 4)
    return {
        "w_ih": jax.random.uniform(k1, (hidden_dim, input_dim), jnp.float32, -k, k),
        "w_hh": jax.random.uniform(k2, (hidden_dim, hidden_dim), jnp.float32, -k, k),
        "b_ih": jax.random.uniform(k3, (hidden_dim,), jnp.float32, -k, k),
        "b_hh": jax.random.uniform(k4, (hidden_dim,), jnp.float32, -k, k),
    }


if __name__ == "__main__":
    # Small shapes consistent with the module: batch == seq so the module's
    # `data + last_hidden` broadcast is well defined; input_dim == hidden_dim.
    B, S, D, H = 8, 8, 32, 32

    key = jax.random.PRNGKey(0)
    kp, kd, kh = jax.random.split(key, 3)
    params = init_params(kp, D, H)
    data = jax.random.normal(kd, (B, S, D), jnp.float32)
    last_hidden = jax.random.normal(kh, (1, B, H), jnp.float32)

    # float32 MXU-operand path (matches the PyTorch module's numerics).
    out, hid = rnn_forward(params, data, last_hidden, matmul_dtype=jnp.float32)
    out, hid = jax.block_until_ready((out, hid))
    out_ref, hid_ref = rnn_forward_ref(params, data, last_hidden, jnp.float32)
    np.testing.assert_allclose(np.asarray(out), np.asarray(out_ref),
                               rtol=1e-5, atol=1e-5)
    np.testing.assert_allclose(np.asarray(hid), np.asarray(hid_ref),
                               rtol=1e-5, atol=1e-5)
    assert out.shape == (B, S, H) and hid.shape == (1, B, H)

    # Default path: bfloat16 MXU operands (f32 accumulation / hidden state).
    out_bf, hid_bf = rnn_forward(params, data, last_hidden)
    out_bf, hid_bf = jax.block_until_ready((out_bf, hid_bf))
    out_bref, hid_bref = rnn_forward_ref(params, data, last_hidden, jnp.bfloat16)
    np.testing.assert_allclose(np.asarray(out_bf), np.asarray(out_bref),
                               rtol=2e-2, atol=2e-2)
    np.testing.assert_allclose(np.asarray(hid_bf), np.asarray(hid_bref),
                               rtol=2e-2, atol=2e-2)

    print("KERNEL_OK")
</pallas_src>

<mosaic_0001>
module attributes {stable_mosaic.version = 11 : i64} {
  func.func @_rnn_fused_kernel(%arg0: i32, %arg1: i32, %arg2: memref<8x8x128xf32, #tpu.memory_space<vmem>>, %arg3: memref<128x128xf32, #tpu.memory_space<vmem>>, %arg4: memref<128x128xf32, #tpu.memory_space<vmem>>, %arg5: memref<1x128xf32, #tpu.memory_space<vmem>>, %arg6: memref<8x128xf32, #tpu.memory_space<vmem>>, %arg7: memref<8x8x128xf32, #tpu.memory_space<vmem>>, %arg8: memref<8x128xf32, #tpu.memory_space<vmem>>, %arg9: memref<8x8x128xf32, #tpu.memory_space<vmem>>) attributes {dimension_semantics = [#tpu.dimension_semantics<parallel>, #tpu.dimension_semantics<arbitrary>], iteration_bounds = array<i64: 1, 1>, scalar_prefetch = 0 : i64, scratch_operands = 2 : i64, tpu.core_type = #tpu.core_type<tc>, window_params = [{transform_indices = @transform_0, window_bounds = array<i64: 8, 8, 128>}, {pipeline_mode = #tpu.pipeline_mode<synchronous>, transform_indices = @transform_1, window_bounds = array<i64: 128, 128>}, {pipeline_mode = #tpu.pipeline_mode<synchronous>, transform_indices = @transform_2, window_bounds = array<i64: 128, 128>}, {pipeline_mode = #tpu.pipeline_mode<synchronous>, transform_indices = @transform_3, window_bounds = array<i64: 1, 128>}, {transform_indices = @transform_4, window_bounds = array<i64: 8, 128>}, {transform_indices = @transform_5, window_bounds = array<i64: 8, 8, 128>}]} {
    %c0_i32 = arith.constant 0 : i32
    %0 = arith.cmpi eq, %arg1, %c0_i32 : i32
    %1 = arith.extui %0 : i1 to i32
    %c0_i32_0 = arith.constant 0 : i32
    %2 = arith.cmpi ne, %1, %c0_i32_0 : i32
    scf.if %2 {
      %c0_79 = arith.constant 0 : index
      %c0_80 = arith.constant 0 : index
      %110 = vector.load %arg6[%c0_79, %c0_80] : memref<8x128xf32, #tpu.memory_space<vmem>>, vector<8x128xf32>
      %c0_81 = arith.constant 0 : index
      %c0_82 = arith.constant 0 : index
      %111 = vector.load %arg8[%c0_81, %c0_82] : memref<8x128xf32, #tpu.memory_space<vmem>>, vector<8x128xf32>
      tpu.vector_store %arg8[%c0_81, %c0_82], %110 {strides = array<i32>} : memref<8x128xf32, #tpu.memory_space<vmem>>, vector<8x128xf32>,
    } else {
    }
    %c0 = arith.constant 0 : index
    %c0_1 = arith.constant 0 : index
    %c0_2 = arith.constant 0 : index
    %3 = vector.load %arg2[%c0, %c0_1, %c0_2] : memref<8x8x128xf32, #tpu.memory_space<vmem>>, vector<8x8x128xf32>
    %4 = vector.shape_cast %3 : vector<8x8x128xf32> to vector<64x128xf32>
    %c0_3 = arith.constant 0 : index
    %c0_4 = arith.constant 0 : index
    %5 = vector.load %arg3[%c0_3, %c0_4] : memref<128x128xf32, #tpu.memory_space<vmem>>, vector<128x128xf32>
    %cst = arith.constant dense<0.000000e+00> : vector<64x128xf32>
    %6 = tpu.matmul %4, %5, %cst {dimension_numbers = #tpu.dot_dimension_numbers<[1], [0], [0], [1], [0, 0, 1, 1], [], []>} : vector<64x128xf32>, vector<128x128xf32>, vector<64x128xf32> -> vector<64x128xf32>
    %c0_5 = arith.constant 0 : index
    %c0_6 = arith.constant 0 : index
    %7 = vector.load %arg5[%c0_5, %c0_6] : memref<1x128xf32, #tpu.memory_space<vmem>>, vector<1x128xf32>
    %8 = vector.broadcast %7 : vector<1x128xf32> to vector<64x128xf32>
    %9 = arith.addf %6, %8 : vector<64x128xf32>
    %10 = vector.shape_cast %9 : vector<64x128xf32> to vector<8x8x128xf32>
    %c0_7 = arith.constant 0 : index
    %c0_8 = arith.constant 0 : index
    %c0_9 = arith.constant 0 : index
    %11 = vector.load %arg9[%c0_7, %c0_8, %c0_9] : memref<8x8x128xf32, #tpu.memory_space<vmem>>, vector<8x8x128xf32>
    tpu.vector_store %arg9[%c0_7, %c0_8, %c0_9], %10 {strides = array<i32>} : memref<8x8x128xf32, #tpu.memory_space<vmem>>, vector<8x8x128xf32>,
    %c0_10 = arith.constant 0 : index
    %c0_11 = arith.constant 0 : index
    %12 = vector.load %arg8[%c0_10, %c0_11] : memref<8x128xf32, #tpu.memory_space<vmem>>, vector<8x128xf32>
    %c0_i32_12 = arith.constant 0 : i32
    %13 = arith.index_cast %c0_i32_12 : i32 to index
    %c0_13 = arith.constant 0 : index
    %c0_14 = arith.constant 0 : index
    %14 = vector.load %arg9[%13, %c0_13, %c0_14] : memref<8x8x128xf32, #tpu.memory_space<vmem>>, vector<1x8x128xf32>
    %15 = vector.shape_cast %14 : vector<1x8x128xf32> to vector<8x128xf32>
    %c0_15 = arith.constant 0 : index
    %c0_16 = arith.constant 0 : index
    %16 = vector.load %arg4[%c0_15, %c0_16] : memref<128x128xf32, #tpu.memory_space<vmem>>, vector<128x128xf32>
    %cst_17 = arith.constant dense<0.000000e+00> : vector<8x128xf32>
    %17 = tpu.matmul %12, %16, %cst_17 {dimension_numbers = #tpu.dot_dimension_numbers<[1], [0], [0], [1], [0, 0, 1, 1], [], []>} : vector<8x128xf32>, vector<128x128xf32>, vector<8x128xf32> -> vector<8x128xf32>
    %18 = arith.addf %15, %17 : vector<8x128xf32>
    %cst_18 = arith.constant 0.000000e+00 : f32
    %19 = vector.broadcast %cst_18 : f32 to vector<8x128xf32>
    %20 = arith.maximumf %18, %19 : vector<8x128xf32>
    %21 = arith.index_cast %c0_i32_12 : i32 to index
    %c0_19 = arith.constant 0 : index
    %c0_20 = arith.constant 0 : index
    %22 = vector.load %arg7[%21, %c0_19, %c0_20] : memref<8x8x128xf32, #tpu.memory_space<vmem>>, vector<1x8x128xf32>
    %23 = vector.shape_cast %22 : vector<1x8x128xf32> to vector<8x128xf32>
    %24 = vector.shape_cast %20 : vector<8x128xf32> to vector<1x8x128xf32>
    tpu.vector_store %arg7[%21, %c0_19, %c0_20], %24 {strides = array<i32>} : memref<8x8x128xf32, #tpu.memory_space<vmem>>, vector<1x8x128xf32>,
    %c1_i32 = arith.constant 1 : i32
    %25 = arith.index_cast %c1_i32 : i32 to index
    %c0_21 = arith.constant 0 : index
    %c0_22 = arith.constant 0 : index
    %26 = vector.load %arg9[%25, %c0_21, %c0_22] : memref<8x8x128xf32, #tpu.memory_space<vmem>>, vector<1x8x128xf32>
    %27 = vector.shape_cast %26 : vector<1x8x128xf32> to vector<8x128xf32>
    %c0_23 = arith.constant 0 : index
    %c0_24 = arith.constant 0 : index
    %28 = vector.load %arg4[%c0_23, %c0_24] : memref<128x128xf32, #tpu.memory_space<vmem>>, vector<128x128xf32>
    %cst_25 = arith.constant dense<0.000000e+00> : vector<8x128xf32>
    %29 = tpu.matmul %20, %28, %cst_25 {dimension_numbers = #tpu.dot_dimension_numbers<[1], [0], [0], [1], [0, 0, 1, 1], [], []>} : vector<8x128xf32>, vector<128x128xf32>, vector<8x128xf32> -> vector<8x128xf32>
    %30 = arith.addf %27, %29 : vector<8x128xf32>
    %cst_26 = arith.constant 0.000000e+00 : f32
    %31 = vector.broadcast %cst_26 : f32 to vector<8x128xf32>
    %32 = arith.maximumf %30, %31 : vector<8x128xf32>
    %33 = arith.index_cast %c1_i32 : i32 to index
    %c0_27 = arith.constant 0 : index
    %c0_28 = arith.constant 0 : index
    %34 = vector.load %arg7[%33, %c0_27, %c0_28] : memref<8x8x128xf32, #tpu.memory_space<vmem>>, vector<1x8x128xf32>
    %35 = vector.shape_cast %34 : vector<1x8x128xf32> to vector<8x128xf32>
    %36 = vector.shape_cast %32 : vector<8x128xf32> to vector<1x8x128xf32>
    tpu.vector_store %arg7[%33, %c0_27, %c0_28], %36 {strides = array<i32>} : memref<8x8x128xf32, #tpu.memory_space<vmem>>, vector<1x8x128xf32>,
    %c2_i32 = arith.constant 2 : i32
    %37 = arith.index_cast %c2_i32 : i32 to index
    %c0_29 = arith.constant 0 : index
    %c0_30 = arith.constant 0 : index
    %38 = vector.load %arg9[%37, %c0_29, %c0_30] : memref<8x8x128xf32, #tpu.memory_space<vmem>>, vector<1x8x128xf32>
    %39 = vector.shape_cast %38 : vector<1x8x128xf32> to vector<8x128xf32>
    %c0_31 = arith.constant 0 : index
    %c0_32 = arith.constant 0 : index
    %40 = vector.load %arg4[%c0_31, %c0_32] : memref<128x128xf32, #tpu.memory_space<vmem>>, vector<128x128xf32>
    %cst_33 = arith.constant dense<0.000000e+00> : vector<8x128xf32>
    %41 = tpu.matmul %32, %40, %cst_33 {dimension_numbers = #tpu.dot_dimension_numbers<[1], [0], [0], [1], [0, 0, 1, 1], [], []>} : vector<8x128xf32>, vector<128x128xf32>, vector<8x128xf32> -> vector<8x128xf32>
    %42 = arith.addf %39, %41 : vector<8x128xf32>
    %cst_34 = arith.constant 0.000000e+00 : f32
    %43 = vector.broadcast %cst_34 : f32 to vector<8x128xf32>
    %44 = arith.maximumf %42, %43 : vector<8x128xf32>
    %45 = arith.index_cast %c2_i32 : i32 to index
    %c0_35 = arith.constant 0 : index
    %c0_36 = arith.constant 0 : index
    %46 = vector.load %arg7[%45, %c0_35, %c0_36] : memref<8x8x128xf32, #tpu.memory_space<vmem>>, vector<1x8x128xf32>
    %47 = vector.shape_cast %46 : vector<1x8x128xf32> to vector<8x128xf32>
    %48 = vector.shape_cast %44 : vector<8x128xf32> to vector<1x8x128xf32>
    tpu.vector_store %arg7[%45, %c0_35, %c0_36], %48 {strides = array<i32>} : memref<8x8x128xf32, #tpu.memory_space<vmem>>, vector<1x8x128xf32>,
    %c3_i32 = arith.constant 3 : i32
    %49 = arith.index_cast %c3_i32 : i32 to index
    %c0_37 = arith.constant 0 : index
    %c0_38 = arith.constant 0 : index
    %50 = vector.load %arg9[%49, %c0_37, %c0_38] : memref<8x8x128xf32, #tpu.memory_space<vmem>>, vector<1x8x128xf32>
    %51 = vector.shape_cast %50 : vector<1x8x128xf32> to vector<8x128xf32>
    %c0_39 = arith.constant 0 : index
    %c0_40 = arith.constant 0 : index
    %52 = vector.load %arg4[%c0_39, %c0_40] : memref<128x128xf32, #tpu.memory_space<vmem>>, vector<128x128xf32>
    %cst_41 = arith.constant dense<0.000000e+00> : vector<8x128xf32>
    %53 = tpu.matmul %44, %52, %cst_41 {dimension_numbers = #tpu.dot_dimension_numbers<[1], [0], [0], [1], [0, 0, 1, 1], [], []>} : vector<8x128xf32>, vector<128x128xf32>, vector<8x128xf32> -> vector<8x128xf32>
    %54 = arith.addf %51, %53 : vector<8x128xf32>
    %cst_42 = arith.constant 0.000000e+00 : f32
    %55 = vector.broadcast %cst_42 : f32 to vector<8x128xf32>
    %56 = arith.maximumf %54, %55 : vector<8x128xf32>
    %57 = arith.index_cast %c3_i32 : i32 to index
    %c0_43 = arith.constant 0 : index
    %c0_44 = arith.constant 0 : index
    %58 = vector.load %arg7[%57, %c0_43, %c0_44] : memref<8x8x128xf32, #tpu.memory_space<vmem>>, vector<1x8x128xf32>
    %59 = vector.shape_cast %58 : vector<1x8x128xf32> to vector<8x128xf32>
    %60 = vector.shape_cast %56 : vector<8x128xf32> to vector<1x8x128xf32>
    tpu.vector_store %arg7[%57, %c0_43, %c0_44], %60 {strides = array<i32>} : memref<8x8x128xf32, #tpu.memory_space<vmem>>, vector<1x8x128xf32>,
    %c4_i32 = arith.constant 4 : i32
    %61 = arith.index_cast %c4_i32 : i32 to index
    %c0_45 = arith.constant 0 : index
    %c0_46 = arith.constant 0 : index
    %62 = vector.load %arg9[%61, %c0_45, %c0_46] : memref<8x8x128xf32, #tpu.memory_space<vmem>>, vector<1x8x128xf32>
    %63 = vector.shape_cast %62 : vector<1x8x128xf32> to vector<8x128xf32>
    %c0_47 = arith.constant 0 : index
    %c0_48 = arith.constant 0 : index
    %64 = vector.load %arg4[%c0_47, %c0_48] : memref<128x128xf32, #tpu.memory_space<vmem>>, vector<128x128xf32>
    %cst_49 = arith.constant dense<0.000000e+00> : vector<8x128xf32>
    %65 = tpu.matmul %56, %64, %cst_49 {dimension_numbers = #tpu.dot_dimension_numbers<[1], [0], [0], [1], [0, 0, 1, 1], [], []>} : vector<8x128xf32>, vector<128x128xf32>, vector<8x128xf32> -> vector<8x128xf32>
    %66 = arith.addf %63, %65 : vector<8x128xf32>
    %cst_50 = arith.constant 0.000000e+00 : f32
    %67 = vector.broadcast %cst_50 : f32 to vector<8x128xf32>
    %68 = arith.maximumf %66, %67 : vector<8x128xf32>
    %69 = arith.index_cast %c4_i32 : i32 to index
    %c0_51 = arith.constant 0 : index
    %c0_52 = arith.constant 0 : index
    %70 = vector.load %arg7[%69, %c0_51, %c0_52] : memref<8x8x128xf32, #tpu.memory_space<vmem>>, vector<1x8x128xf32>
    %71 = vector.shape_cast %70 : vector<1x8x128xf32> to vector<8x128xf32>
    %72 = vector.shape_cast %68 : vector<8x128xf32> to vector<1x8x128xf32>
    tpu.vector_store %arg7[%69, %c0_51, %c0_52], %72 {strides = array<i32>} : memref<8x8x128xf32, #tpu.memory_space<vmem>>, vector<1x8x128xf32>,
    %c5_i32 = arith.constant 5 : i32
    %73 = arith.index_cast %c5_i32 : i32 to index
    %c0_53 = arith.constant 0 : index
    %c0_54 = arith.constant 0 : index
    %74 = vector.load %arg9[%73, %c0_53, %c0_54] : memref<8x8x128xf32, #tpu.memory_space<vmem>>, vector<1x8x128xf32>
    %75 = vector.shape_cast %74 : vector<1x8x128xf32> to vector<8x128xf32>
    %c0_55 = arith.constant 0 : index
    %c0_56 = arith.constant 0 : index
    %76 = vector.load %arg4[%c0_55, %c0_56] : memref<128x128xf32, #tpu.memory_space<vmem>>, vector<128x128xf32>
    %cst_57 = arith.constant dense<0.000000e+00> : vector<8x128xf32>
    %77 = tpu.matmul %68, %76, %cst_57 {dimension_numbers = #tpu.dot_dimension_numbers<[1], [0], [0], [1], [0, 0, 1, 1], [], []>} : vector<8x128xf32>, vector<128x128xf32>, vector<8x128xf32> -> vector<8x128xf32>
    %78 = arith.addf %75, %77 : vector<8x128xf32>
    %cst_58 = arith.constant 0.000000e+00 : f32
    %79 = vector.broadcast %cst_58 : f32 to vector<8x128xf32>
    %80 = arith.maximumf %78, %79 : vector<8x128xf32>
    %81 = arith.index_cast %c5_i32 : i32 to index
    %c0_59 = arith.constant 0 : index
    %c0_60 = arith.constant 0 : index
    %82 = vector.load %arg7[%81, %c0_59, %c0_60] : memref<8x8x128xf32, #tpu.memory_space<vmem>>, vector<1x8x128xf32>
    %83 = vector.shape_cast %82 : vector<1x8x128xf32> to vector<8x128xf32>
    %84 = vector.shape_cast %80 : vector<8x128xf32> to vector<1x8x128xf32>
    tpu.vector_store %arg7[%81, %c0_59, %c0_60], %84 {strides = array<i32>} : memref<8x8x128xf32, #tpu.memory_space<vmem>>, vector<1x8x128xf32>,
    %c6_i32 = arith.constant 6 : i32
    %85 = arith.index_cast %c6_i32 : i32 to index
    %c0_61 = arith.constant 0 : index
    %c0_62 = arith.constant 0 : index
    %86 = vector.load %arg9[%85, %c0_61, %c0_62] : memref<8x8x128xf32, #tpu.memory_space<vmem>>, vector<1x8x128xf32>
    %87 = vector.shape_cast %86 : vector<1x8x128xf32> to vector<8x128xf32>
    %c0_63 = arith.constant 0 : index
    %c0_64 = arith.constant 0 : index
    %88 = vector.load %arg4[%c0_63, %c0_64] : memref<128x128xf32, #tpu.memory_space<vmem>>, vector<128x128xf32>
    %cst_65 = arith.constant dense<0.000000e+00> : vector<8x128xf32>
    %89 = tpu.matmul %80, %88, %cst_65 {dimension_numbers = #tpu.dot_dimension_numbers<[1], [0], [0], [1], [0, 0, 1, 1], [], []>} : vector<8x128xf32>, vector<128x128xf32>, vector<8x128xf32> -> vector<8x128xf32>
    %90 = arith.addf %87, %89 : vector<8x128xf32>
    %cst_66 = arith.constant 0.000000e+00 : f32
    %91 = vector.broadcast %cst_66 : f32 to vector<8x128xf32>
    %92 = arith.maximumf %90, %91 : vector<8x128xf32>
    %93 = arith.index_cast %c6_i32 : i32 to index
    %c0_67 = arith.constant 0 : index
    %c0_68 = arith.constant 0 : index
    %94 = vector.load %arg7[%93, %c0_67, %c0_68] : memref<8x8x128xf32, #tpu.memory_space<vmem>>, vector<1x8x128xf32>
    %95 = vector.shape_cast %94 : vector<1x8x128xf32> to vector<8x128xf32>
    %96 = vector.shape_cast %92 : vector<8x128xf32> to vector<1x8x128xf32>
    tpu.vector_store %arg7[%93, %c0_67, %c0_68], %96 {strides = array<i32>} : memref<8x8x128xf32, #tpu.memory_space<vmem>>, vector<1x8x128xf32>,
    %c7_i32 = arith.constant 7 : i32
    %97 = arith.index_cast %c7_i32 : i32 to index
    %c0_69 = arith.constant 0 : index
    %c0_70 = arith.constant 0 : index
    %98 = vector.load %arg9[%97, %c0_69, %c0_70] : memref<8x8x128xf32, #tpu.memory_space<vmem>>, vector<1x8x128xf32>
    %99 = vector.shape_cast %98 : vector<1x8x128xf32> to vector<8x128xf32>
    %c0_71 = arith.constant 0 : index
    %c0_72 = arith.constant 0 : index
    %100 = vector.load %arg4[%c0_71, %c0_72] : memref<128x128xf32, #tpu.memory_space<vmem>>, vector<128x128xf32>
    %cst_73 = arith.constant dense<0.000000e+00> : vector<8x128xf32>
    %101 = tpu.matmul %92, %100, %cst_73 {dimension_numbers = #tpu.dot_dimension_numbers<[1], [0], [0], [1], [0, 0, 1, 1], [], []>} : vector<8x128xf32>, vector<128x128xf32>, vector<8x128xf32> -> vector<8x128xf32>
    %102 = arith.addf %99, %101 : vector<8x128xf32>
    %cst_74 = arith.constant 0.000000e+00 : f32
    %103 = vector.broadcast %cst_74 : f32 to vector<8x128xf32>
    %104 = arith.maximumf %102, %103 : vector<8x128xf32>
    %105 = arith.index_cast %c7_i32 : i32 to index
    %c0_75 = arith.constant 0 : index
    %c0_76 = arith.constant 0 : index
    %106 = vector.load %arg7[%105, %c0_75, %c0_76] : memref<8x8x128xf32, #tpu.memory_space<vmem>>, vector<1x8x128xf32>
    %107 = vector.shape_cast %106 : vector<1x8x128xf32> to vector<8x128xf32>
    %108 = vector.shape_cast %104 : vector<8x128xf32> to vector<1x8x128xf32>
    tpu.vector_store %arg7[%105, %c0_75, %c0_76], %108 {strides = array<i32>} : memref<8x8x128xf32, #tpu.memory_space<vmem>>, vector<1x8x128xf32>,
    %c8_i32 = arith.constant 8 : i32
    %c0_77 = arith.constant 0 : index
    %c0_78 = arith.constant 0 : index
    %109 = vector.load %arg8[%c0_77, %c0_78] : memref<8x128xf32, #tpu.memory_space<vmem>>, vector<8x128xf32>
    tpu.vector_store %arg8[%c0_77, %c0_78], %104 {strides = array<i32>} : memref<8x128xf32, #tpu.memory_space<vmem>>, vector<8x128xf32>,
    return
  }
  func.func @transform_0(%arg0: i32, %arg1: i32) -> (i32, i32, i32) {
    %c0_i32 = arith.constant 0 : i32
    %c0_i32_0 = arith.constant 0 : i32
    return %arg1, %arg0, %c0_i32 : i32, i32, i32
  }
  func.func @transform_1(%arg0: i32, %arg1: i32) -> (i32, i32) {
    %c0_i32 = arith.constant 0 : i32
    %c0_i32_0 = arith.constant 0 : i32
    %c0_i32_1 = arith.constant 0 : i32
    return %c0_i32, %c0_i32_0 : i32, i32
  }
  func.func @transform_2(%arg0: i32, %arg1: i32) -> (i32, i32) {
    %c0_i32 = arith.constant 0 : i32
    %c0_i32_0 = arith.constant 0 : i32
    %c0_i32_1 = arith.constant 0 : i32
    return %c0_i32, %c0_i32_0 : i32, i32
  }
  func.func @transform_3(%arg0: i32, %arg1: i32) -> (i32, i32) {
    %c0_i32 = arith.constant 0 : i32
    %c0_i32_0 = arith.constant 0 : i32
    %c0_i32_1 = arith.constant 0 : i32
    return %c0_i32, %c0_i32_0 : i32, i32
  }
  func.func @transform_4(%arg0: i32, %arg1: i32) -> (i32, i32) {
    %c0_i32 = arith.constant 0 : i32
    %c0_i32_0 = arith.constant 0 : i32
    return %arg0, %c0_i32 : i32, i32
  }
  func.func @transform_5(%arg0: i32, %arg1: i32) -> (i32, i32, i32) {
    %c0_i32 = arith.constant 0 : i32
    %c0_i32_0 = arith.constant 0 : i32
    return %arg1, %arg0, %c0_i32 : i32, i32, i32
  }
}

</mosaic_0001>

<llo_original>
// kernel: rnn_forward.1
$region0: #{rnn_forward.1}
  #allocation0 [shape = 'u32[]', space=smem, size = 0x4, offset = 0x4, fixed_abs, tag = 'smem constant byte address 0x4 - core index']
  #allocation1 [shape = 'u32[144,128]{1,0:T(1,128)}', space=vmem, size = 0x12000, scoped, tag = 'internal scratch']
  #allocation2 [shape = 'f32[8,128]{1,0:T(8,128)}', space=vmem, size = 0x1000, scoped, tag = 'scratch operand']
  #allocation3 [shape = 'f32[8,8,128]{2,1,0:T(8,128)}', space=vmem, size = 0x8000, scoped, tag = 'scratch operand']
  %s0 = inlined_call_operand.vmem [shape: f32[8,8,128], index: 0, kind: input, shape index: {}]
  %s1 = inlined_call_operand.vmem [shape: f32[128,128], index: 1, kind: input, shape index: {}]
  %s2 = inlined_call_operand.vmem [shape: f32[128,128], index: 2, kind: input, shape index: {}]
  %s3 = inlined_call_operand.vmem [shape: f32[1,128], index: 3, kind: input, shape index: {}]
  %s4 = inlined_call_operand.vmem [shape: f32[8,128], index: 4, kind: input, shape index: {}]
  %s5 = inlined_call_operand.vmem [shape: f32[8,8,128], index: 5, kind: output, shape index: {}]
  %s6 = sld [smem:[#allocation0]]
  $region34: #{rnn_forward.1} parent=0
    _
  %s8 = ssub.s32 1, %s6
  %s9 = scalar_select 0, %s8, %s6
  // Predicated region
  $region2: #{rnn_forward.1} parent=0 // pred_check
    _
  $region3: #{rnn_forward.1} parent=0 // pred_check_branch
    %11 = sbr.rel (0) target = $region5
  $region4: #{rnn_forward.1} parent=0 // pred_region
    _
  $region5: #{rnn_forward.1} parent=0 // pred_fallthru
    _
  // Predicated region
  $region6: #{rnn_forward.1} parent=0 // pred_check
    _
  $region7: #{rnn_forward.1} parent=0 // pred_check_branch
    %13 = sbr.rel (0) target = $region9
  $region8: #{rnn_forward.1} parent=0 // pred_region
    _
  $region9: #{rnn_forward.1} parent=0 // pred_fallthru
    _
  // Predicated region
  $region10: #{rnn_forward.1} parent=0 // pred_check
    _
  $region11: #{rnn_forward.1} parent=0 // pred_check_branch
    %15 = sbr.rel (0) target = $region13
  $region12: #{rnn_forward.1} parent=0 // pred_region
    _
  $region13: #{rnn_forward.1} parent=0 // pred_fallthru
    _
  // Predicated region
  $region14: #{rnn_forward.1} parent=0 // pred_check
    _
  $region15: #{rnn_forward.1} parent=0 // pred_check_branch
    %17 = sbr.rel (0) target = $region17
  $region16: #{rnn_forward.1} parent=0 // pred_region
    _
  $region17: #{rnn_forward.1} parent=0 // pred_fallthru
    _
  // Predicated region
  $region18: #{rnn_forward.1} parent=0 // pred_check
    _
  $region19: #{rnn_forward.1} parent=0 // pred_check_branch
    %19 = sbr.rel (0) target = $region21
  $region20: #{rnn_forward.1} parent=0 // pred_region
    _
  $region21: #{rnn_forward.1} parent=0 // pred_fallthru
    _
  %p20 = scmp.eq.s32.totalorder 0, 0
  // Predicated region
  $region22: #{rnn_forward.1} parent=0 // pred_check
    %p21 = pneg %p20
  $region23: #{rnn_forward.1} parent=0 // pred_check_branch
    %23 = sbr.rel (%p21) target = $region25
  $region24: #{rnn_forward.1} parent=0 // pred_region
    %v24 = vld [vmem:[%s4] sm:$0xff]
    %25 = vst [vmem:[#allocation2] sm:$0xff] %v24
  $region25: #{rnn_forward.1} parent=0 // pred_fallthru
    _
  %v26 = vld [vmem:[%s0] sm:$0xff]
  %v27 = vld [vmem:[%s0 + $0x8] sm:$0xff]
  %v28 = vld [vmem:[%s0 + $0x10] sm:$0xff]
  %v29 = vld [vmem:[%s0 + $0x18] sm:$0xff]
  %v30 = vld [vmem:[%s0 + $0x20] sm:$0xff]
  %v31 = vld [vmem:[%s0 + $0x28] sm:$0xff]
  %v32 = vld [vmem:[%s0 + $0x30] sm:$0xff]
  %v33 = vld [vmem:[%s0 + $0x38] sm:$0xff]
  %v34 = vld [vmem:[%s1] sm:$0xff]
  %v35 = vld [vmem:[%s1 + $0x8] sm:$0xff]
  %v36 = vld [vmem:[%s1 + $0x10] sm:$0xff]
  %v37 = vld [vmem:[%s1 + $0x18] sm:$0xff]
  %v38 = vld [vmem:[%s1 + $0x20] sm:$0xff]
  %v39 = vld [vmem:[%s1 + $0x28] sm:$0xff]
  %v40 = vld [vmem:[%s1 + $0x30] sm:$0xff]
  %v41 = vld [vmem:[%s1 + $0x38] sm:$0xff]
  %v42 = vld [vmem:[%s1 + $0x40] sm:$0xff]
  %v43 = vld [vmem:[%s1 + $0x48] sm:$0xff]
  %v44 = vld [vmem:[%s1 + $0x50] sm:$0xff]
  %v45 = vld [vmem:[%s1 + $0x58] sm:$0xff]
  %v46 = vld [vmem:[%s1 + $0x60] sm:$0xff]
  %v47 = vld [vmem:[%s1 + $0x68] sm:$0xff]
  %v48 = vld [vmem:[%s1 + $0x70] sm:$0xff]
  %v49 = vld [vmem:[%s1 + $0x78] sm:$0xff]
  %v50 = vld [vmem:[%s3] sm:$0x1]
  %v52 = vlaneseq
  %v53 = vshrl.u32 %v52, 7
  %v54 = vsub.s32 0, %v53
  %v55 = vrot.slane %v50, %v54
  %57 = vmatprep.subr.mxu0 0.0
  %58 = vmatpush1.msra.mxu0 %v34
  %59 = vmatprep.subr.mxu0 0.0
  %60 = vmatpush1.msra.mxu0 %v35
  %61 = vmatprep.subr.mxu0 0.0
  %62 = vmatpush1.msra.mxu0 %v36
  %63 = vmatprep.subr.mxu0 0.0
  %64 = vmatpush1.msra.mxu0 %v37
  %65 = vmatprep.subr.mxu0 0.0
  %66 = vmatpush1.msra.mxu0 %v38
  %67 = vmatprep.subr.mxu0 0.0
  %68 = vmatpush1.msra.mxu0 %v39
  %69 = vmatprep.subr.mxu0 0.0
  %70 = vmatpush1.msra.mxu0 %v40
  %71 = vmatprep.subr.mxu0 0.0
  %72 = vmatpush1.msra.mxu0 %v41
  %73 = vmatprep.subr.mxu0 0.0
  %74 = vmatpush1.msra.mxu0 %v42
  %75 = vmatprep.subr.mxu0 0.0
  %76 = vmatpush1.msra.mxu0 %v43
  %77 = vmatprep.subr.mxu0 0.0
  %78 = vmatpush1.msra.mxu0 %v44
  %79 = vmatprep.subr.mxu0 0.0
  %80 = vmatpush1.msra.mxu0 %v45
  %81 = vmatprep.subr.mxu0 0.0
  %82 = vmatpush1.msra.mxu0 %v46
  %83 = vmatprep.subr.mxu0 0.0
  %84 = vmatpush1.msra.mxu0 %v47
  %85 = vmatprep.subr.mxu0 0.0
  %86 = vmatpush1.msra.mxu0 %v48
  %87 = vmatprep.subr.mxu0 0.0
  %88 = vmatpush1.msra.mxu0 %v49
  %89 = vmatprep.subr.mxu0 0.0
  %90 = vmatpush1.msra.mxu0 0.0
  %91 = vmatprep.subr.mxu0 0.0
  %92 = vmatpush1.msra.mxu0 0.0
  %93 = vmatprep.subr.mxu0 0.0
  %94 = vmatpush1.msra.mxu0 0.0
  %95 = vmatprep.subr.mxu0 0.0
  %96 = vmatpush1.msra.mxu0 0.0
  %97 = vmatprep.subr.mxu0 0.0
  %98 = vmatpush1.msra.mxu0 0.0
  %99 = vmatprep.subr.mxu0 0.0
  %100 = vmatpush1.msra.mxu0 0.0
  %101 = vmatprep.subr.mxu0 0.0
  %102 = vmatpush1.msra.mxu0 0.0
  %103 = vmatprep.subr.mxu0 0.0
  %104 = vmatpush1.msra.mxu0 0.0
  %105 = vmatprep.subr.mxu0 0.0
  %106 = vmatpush1.msra.mxu0 0.0
  %107 = vmatprep.subr.mxu0 0.0
  %108 = vmatpush1.msra.mxu0 0.0
  %109 = vmatprep.subr.mxu0 0.0
  %110 = vmatpush1.msra.mxu0 0.0
  %111 = vmatprep.subr.mxu0 0.0
  %112 = vmatpush1.msra.mxu0 0.0
  %113 = vmatprep.subr.mxu0 0.0
  %114 = vmatpush1.msra.mxu0 0.0
  %115 = vmatprep.subr.mxu0 0.0
  %116 = vmatpush1.msra.mxu0 0.0
  %117 = vmatprep.subr.mxu0 0.0
  %118 = vmatpush1.msra.mxu0 0.0
  %119 = vmatprep.subr.mxu0 0.0
  %120 = vmatpush1.msra.mxu0 0.0
  %121 = vmatprep.mubr.f32.mxu0 0.0
  %122 = vmatmul.mubr.f32.gmra.mrb[0].mxu0 %v26
  %v123 = vpop.f32.mrb[0].mxu0
  %v124 = vadd.f32 %v55, %v123
  %v125 = vpop.f32.mrb[0].mxu0
  %126 = vmatprep.mubr.f32.mxu0 0.0
  %127 = vmatmul.mubr.f32.gmra.mrb[0].mxu0 %v27
  %v128 = vpop.f32.mrb[0].mxu0
  %v129 = vadd.f32 %v55, %v128
  %v130 = vpop.f32.mrb[0].mxu0
  %131 = vmatprep.mubr.f32.mxu0 0.0
  %132 = vmatmul.mubr.f32.gmra.mrb[0].mxu0 %v28
  %v133 = vpop.f32.mrb[0].mxu0
  %v134 = vadd.f32 %v55, %v133
  %v135 = vpop.f32.mrb[0].mxu0
  %136 = vmatprep.mubr.f32.mxu0 0.0
  %137 = vmatmul.mubr.f32.gmra.mrb[0].mxu0 %v29
  %v138 = vpop.f32.mrb[0].mxu0
  %v139 = vadd.f32 %v55, %v138
  %v140 = vpop.f32.mrb[0].mxu0
  %141 = vmatprep.mubr.f32.mxu0 0.0
  %142 = vmatmul.mubr.f32.gmra.mrb[0].mxu0 %v30
  %v143 = vpop.f32.mrb[0].mxu0
  %v144 = vadd.f32 %v55, %v143
  %v145 = vpop.f32.mrb[0].mxu0
  %146 = vmatprep.mubr.f32.mxu0 0.0
  %147 = vmatmul.mubr.f32.gmra.mrb[0].mxu0 %v31
  %v148 = vpop.f32.mrb[0].mxu0
  %v149 = vadd.f32 %v55, %v148
  %v150 = vpop.f32.mrb[0].mxu0
  %151 = vmatprep.mubr.f32.mxu0 0.0
  %152 = vmatmul.mubr.f32.gmra.mrb[0].mxu0 %v32
  %v153 = vpop.f32.mrb[0].mxu0
  %v154 = vadd.f32 %v55, %v153
  %v155 = vpop.f32.mrb[0].mxu0
  %156 = vmatprep.mubr.f32.mxu0 0.0
  %157 = vmatmul.mubr.f32.gmra.mrb[0].mxu0 %v33
  %v158 = vpop.f32.mrb[0].mxu0
  %v159 = vadd.f32 %v55, %v158
  %v160 = vpop.f32.mrb[0].mxu0
  %161 = vdwg.mxu0
  %162 = vst [vmem:[#allocation3] sm:$0xff] %v124
  %163 = vst [vmem:[#allocation3 + $0x8] sm:$0xff] %v129
  %164 = vst [vmem:[#allocation3 + $0x10] sm:$0xff] %v134
  %165 = vst [vmem:[#allocation3 + $0x18] sm:$0xff] %v139
  %166 = vst [vmem:[#allocation3 + $0x20] sm:$0xff] %v144
  %167 = vst [vmem:[#allocation3 + $0x28] sm:$0xff] %v149
  %168 = vst [vmem:[#allocation3 + $0x30] sm:$0xff] %v154
  %169 = vst [vmem:[#allocation3 + $0x38] sm:$0xff] %v159
  %v170 = vld [vmem:[#allocation2] sm:$0xff]
  %v171 = vld [vmem:[#allocation3] sm:$0xff]
  %v172 = vld [vmem:[%s2] sm:$0xff]
  %v173 = vld [vmem:[%s2 + $0x8] sm:$0xff]
  %v174 = vld [vmem:[%s2 + $0x10] sm:$0xff]
  %v175 = vld [vmem:[%s2 + $0x18] sm:$0xff]
  %v176 = vld [vmem:[%s2 + $0x20] sm:$0xff]
  %v177 = vld [vmem:[%s2 + $0x28] sm:$0xff]
  %v178 = vld [vmem:[%s2 + $0x30] sm:$0xff]
  %v179 = vld [vmem:[%s2 + $0x38] sm:$0xff]
  %v180 = vld [vmem:[%s2 + $0x40] sm:$0xff]
  %v181 = vld [vmem:[%s2 + $0x48] sm:$0xff]
  %v182 = vld [vmem:[%s2 + $0x50] sm:$0xff]
  %v183 = vld [vmem:[%s2 + $0x58] sm:$0xff]
  %v184 = vld [vmem:[%s2 + $0x60] sm:$0xff]
  %v185 = vld [vmem:[%s2 + $0x68] sm:$0xff]
  %v186 = vld [vmem:[%s2 + $0x70] sm:$0xff]
  %v187 = vld [vmem:[%s2 + $0x78] sm:$0xff]
  %188 = vmatprep.subr.mxu0 0.0
  %189 = vmatpush1.msra.mxu0 %v172
  %190 = vmatprep.subr.mxu0 0.0
  %191 = vmatpush1.msra.mxu0 %v173
  %192 = vmatprep.subr.mxu0 0.0
  %193 = vmatpush1.msra.mxu0 %v174
  %194 = vmatprep.subr.mxu0 0.0
  %195 = vmatpush1.msra.mxu0 %v175
  %196 = vmatprep.subr.mxu0 0.0
  %197 = vmatpush1.msra.mxu0 %v176
  %198 = vmatprep.subr.mxu0 0.0
  %199 = vmatpush1.msra.mxu0 %v177
  %200 = vmatprep.subr.mxu0 0.0
  %201 = vmatpush1.msra.mxu0 %v178
  %202 = vmatprep.subr.mxu0 0.0
  %203 = vmatpush1.msra.mxu0 %v179
  %204 = vmatprep.subr.mxu0 0.0
  %205 = vmatpush1.msra.mxu0 %v180
  %206 = vmatprep.subr.mxu0 0.0
  %207 = vmatpush1.msra.mxu0 %v181
  %208 = vmatprep.subr.mxu0 0.0
  %209 = vmatpush1.msra.mxu0 %v182
  %210 = vmatprep.subr.mxu0 0.0
  %211 = vmatpush1.msra.mxu0 %v183
  %212 = vmatprep.subr.mxu0 0.0
  %213 = vmatpush1.msra.mxu0 %v184
  %214 = vmatprep.subr.mxu0 0.0
  %215 = vmatpush1.msra.mxu0 %v185
  %216 = vmatprep.subr.mxu0 0.0
  %217 = vmatpush1.msra.mxu0 %v186
  %218 = vmatprep.subr.mxu0 0.0
  %219 = vmatpush1.msra.mxu0 %v187
  %220 = vmatprep.subr.mxu0 0.0
  %221 = vmatpush1.msra.mxu0 0.0
  %222 = vmatprep.subr.mxu0 0.0
  %223 = vmatpush1.msra.mxu0 0.0
  %224 = vmatprep.subr.mxu0 0.0
  %225 = vmatpush1.msra.mxu0 0.0
  %226 = vmatprep.subr.mxu0 0.0
  %227 = vmatpush1.msra.mxu0 0.0
  %228 = vmatprep.subr.mxu0 0.0
  %229 = vmatpush1.msra.mxu0 0.0
  %230 = vmatprep.subr.mxu0 0.0
  %231 = vmatpush1.msra.mxu0 0.0
  %232 = vmatprep.subr.mxu0 0.0
  %233 = vmatpush1.msra.mxu0 0.0
  %234 = vmatprep.subr.mxu0 0.0
  %235 = vmatpush1.msra.mxu0 0.0
  %236 = vmatprep.subr.mxu0 0.0
  %237 = vmatpush1.msra.mxu0 0.0
  %238 = vmatprep.subr.mxu0 0.0
  %239 = vmatpush1.msra.mxu0 0.0
  %240 = vmatprep.subr.mxu0 0.0
  %241 = vmatpush1.msra.mxu0 0.0
  %242 = vmatprep.subr.mxu0 0.0
  %243 = vmatpush1.msra.mxu0 0.0
  %244 = vmatprep.subr.mxu0 0.0
  %245 = vmatpush1.msra.mxu0 0.0
  %246 = vmatprep.subr.mxu0 0.0
  %247 = vmatpush1.msra.mxu0 0.0
  %248 = vmatprep.subr.mxu0 0.0
  %249 = vmatpush1.msra.mxu0 0.0
  %250 = vmatprep.subr.mxu0 0.0
  %251 = vmatpush1.msra.mxu0 0.0
  %252 = vmatprep.mubr.f32.mxu0 0.0
  %253 = vmatmul.mubr.f32.gmra.mrb[0].mxu0 %v170
  %v254 = vpop.f32.mrb[0].mxu0
  %v255 = vadd.f32 0.0, %v254
  %v256 = vpop.f32.mrb[0].mxu0
  %257 = vdwg.mxu0
  %v258 = vadd.f32 %v171, %v255
  %v259 = vmax.f32 %v258, 0.0
  %260 = vst [vmem:[%s5] sm:$0xff] %v259
  %s261 = scalar_lea.vmem [#allocation3], 8
  %v262 = vld [vmem:[%s261] sm:$0xff]
  %v263 = vld [vmem:[%s2] sm:$0xff]
  %v264 = vld [vmem:[%s2 + $0x8] sm:$0xff]
  %v265 = vld [vmem:[%s2 + $0x10] sm:$0xff]
  %v266 = vld [vmem:[%s2 + $0x18] sm:$0xff]
  %v267 = vld [vmem:[%s2 + $0x20] sm:$0xff]
  %v268 = vld [vmem:[%s2 + $0x28] sm:$0xff]
  %v269 = vld [vmem:[%s2 + $0x30] sm:$0xff]
  %v270 = vld [vmem:[%s2 + $0x38] sm:$0xff]
  %v271 = vld [vmem:[%s2 + $0x40] sm:$0xff]
  %v272 = vld [vmem:[%s2 + $0x48] sm:$0xff]
  %v273 = vld [vmem:[%s2 + $0x50] sm:$0xff]
  %v274 = vld [vmem:[%s2 + $0x58] sm:$0xff]
  %v275 = vld [vmem:[%s2 + $0x60] sm:$0xff]
  %v276 = vld [vmem:[%s2 + $0x68] sm:$0xff]
  %v277 = vld [vmem:[%s2 + $0x70] sm:$0xff]
  %v278 = vld [vmem:[%s2 + $0x78] sm:$0xff]
  %279 = vmatprep.subr.mxu0 0.0
  %280 = vmatpush1.msra.mxu0 %v263
  %281 = vmatprep.subr.mxu0 0.0
  %282 = vmatpush1.msra.mxu0 %v264
  %283 = vmatprep.subr.mxu0 0.0
  %284 = vmatpush1.msra.mxu0 %v265
  %285 = vmatprep.subr.mxu0 0.0
  %286 = vmatpush1.msra.mxu0 %v266
  %287 = vmatprep.subr.mxu0 0.0
  %288 = vmatpush1.msra.mxu0 %v267
  %289 = vmatprep.subr.mxu0 0.0
  %290 = vmatpush1.msra.mxu0 %v268
  %291 = vmatprep.subr.mxu0 0.0
  %292 = vmatpush1.msra.mxu0 %v269
  %293 = vmatprep.subr.mxu0 0.0
  %294 = vmatpush1.msra.mxu0 %v270
  %295 = vmatprep.subr.mxu0 0.0
  %296 = vmatpush1.msra.mxu0 %v271
  %297 = vmatprep.subr.mxu0 0.0
  %298 = vmatpush1.msra.mxu0 %v272
  %299 = vmatprep.subr.mxu0 0.0
  %300 = vmatpush1.msra.mxu0 %v273
  %301 = vmatprep.subr.mxu0 0.0
  %302 = vmatpush1.msra.mxu0 %v274
  %303 = vmatprep.subr.mxu0 0.0
  %304 = vmatpush1.msra.mxu0 %v275
  %305 = vmatprep.subr.mxu0 0.0
  %306 = vmatpush1.msra.mxu0 %v276
  %307 = vmatprep.subr.mxu0 0.0
  %308 = vmatpush1.msra.mxu0 %v277
  %309 = vmatprep.subr.mxu0 0.0
  %310 = vmatpush1.msra.mxu0 %v278
  %311 = vmatprep.subr.mxu0 0.0
  %312 = vmatpush1.msra.mxu0 0.0
  %313 = vmatprep.subr.mxu0 0.0
  %314 = vmatpush1.msra.mxu0 0.0
  %315 = vmatprep.subr.mxu0 0.0
  %316 = vmatpush1.msra.mxu0 0.0
  %317 = vmatprep.subr.mxu0 0.0
  %318 = vmatpush1.msra.mxu0 0.0
  %319 = vmatprep.subr.mxu0 0.0
  %320 = vmatpush1.msra.mxu0 0.0
  %321 = vmatprep.subr.mxu0 0.0
  %322 = vmatpush1.msra.mxu0 0.0
  %323 = vmatprep.subr.mxu0 0.0
  %324 = vmatpush1.msra.mxu0 0.0
  %325 = vmatprep.subr.mxu0 0.0
  %326 = vmatpush1.msra.mxu0 0.0
  %327 = vmatprep.subr.mxu0 0.0
  %328 = vmatpush1.msra.mxu0 0.0
  %329 = vmatprep.subr.mxu0 0.0
  %330 = vmatpush1.msra.mxu0 0.0
  %331 = vmatprep.subr.mxu0 0.0
  %332 = vmatpush1.msra.mxu0 0.0
  %333 = vmatprep.subr.mxu0 0.0
  %334 = vmatpush1.msra.mxu0 0.0
  %335 = vmatprep.subr.mxu0 0.0
  %336 = vmatpush1.msra.mxu0 0.0
  %337 = vmatprep.subr.mxu0 0.0
  %338 = vmatpush1.msra.mxu0 0.0
  %339 = vmatprep.subr.mxu0 0.0
  %340 = vmatpush1.msra.mxu0 0.0
  %341 = vmatprep.subr.mxu0 0.0
  %342 = vmatpush1.msra.mxu0 0.0
  %343 = vmatprep.mubr.f32.mxu0 0.0
  %344 = vmatmul.mubr.f32.gmra.mrb[0].mxu0 %v259
  %v345 = vpop.f32.mrb[0].mxu0
  %v346 = vadd.f32 0.0, %v345
  %v347 = vpop.f32.mrb[0].mxu0
  %348 = vdwg.mxu0
  %v349 = vadd.f32 %v262, %v346
  %v350 = vmax.f32 %v349, 0.0
  %s351 = scalar_lea.vmem %s5, 8
  %352 = vst [vmem:[%s351] sm:$0xff] %v350
  %s353 = scalar_lea.vmem [#allocation3], 16
  %v354 = vld [vmem:[%s353] sm:$0xff]
  %v355 = vld [vmem:[%s2] sm:$0xff]
  %v356 = vld [vmem:[%s2 + $0x8] sm:$0xff]
  %v357 = vld [vmem:[%s2 + $0x10] sm:$0xff]
  %v358 = vld [vmem:[%s2 + $0x18] sm:$0xff]
  %v359 = vld [vmem:[%s2 + $0x20] sm:$0xff]
  %v360 = vld [vmem:[%s2 + $0x28] sm:$0xff]
  %v361 = vld [vmem:[%s2 + $0x30] sm:$0xff]
  %v362 = vld [vmem:[%s2 + $0x38] sm:$0xff]
  %v363 = vld [vmem:[%s2 + $0x40] sm:$0xff]
  %v364 = vld [vmem:[%s2 + $0x48] sm:$0xff]
  %v365 = vld [vmem:[%s2 + $0x50] sm:$0xff]
  %v366 = vld [vmem:[%s2 + $0x58] sm:$0xff]
  %v367 = vld [vmem:[%s2 + $0x60] sm:$0xff]
  %v368 = vld [vmem:[%s2 + $0x68] sm:$0xff]
  %v369 = vld [vmem:[%s2 + $0x70] sm:$0xff]
  %v370 = vld [vmem:[%s2 + $0x78] sm:$0xff]
  %371 = vmatprep.subr.mxu0 0.0
  %372 = vmatpush1.msra.mxu0 %v355
  %373 = vmatprep.subr.mxu0 0.0
  %374 = vmatpush1.msra.mxu0 %v356
  %375 = vmatprep.subr.mxu0 0.0
  %376 = vmatpush1.msra.mxu0 %v357
  %377 = vmatprep.subr.mxu0 0.0
  %378 = vmatpush1.msra.mxu0 %v358
  %379 = vmatprep.subr.mxu0 0.0
  %380 = vmatpush1.msra.mxu0 %v359
  %381 = vmatprep.subr.mxu0 0.0
  %382 = vmatpush1.msra.mxu0 %v360
  %383 = vmatprep.subr.mxu0 0.0
  %384 = vmatpush1.msra.mxu0 %v361
  %385 = vmatprep.subr.mxu0 0.0
  %386 = vmatpush1.msra.mxu0 %v362
  %387 = vmatprep.subr.mxu0 0.0
  %388 = vmatpush1.msra.mxu0 %v363
  %389 = vmatprep.subr.mxu0 0.0
  %390 = vmatpush1.msra.mxu0 %v364
  %391 = vmatprep.subr.mxu0 0.0
  %392 = vmatpush1.msra.mxu0 %v365
  %393 = vmatprep.subr.mxu0 0.0
  %394 = vmatpush1.msra.mxu0 %v366
  %395 = vmatprep.subr.mxu0 0.0
  %396 = vmatpush1.msra.mxu0 %v367
  %397 = vmatprep.subr.mxu0 0.0
  %398 = vmatpush1.msra.mxu0 %v368
  %399 = vmatprep.subr.mxu0 0.0
  %400 = vmatpush1.msra.mxu0 %v369
  %401 = vmatprep.subr.mxu0 0.0
  %402 = vmatpush1.msra.mxu0 %v370
  %403 = vmatprep.subr.mxu0 0.0
  %404 = vmatpush1.msra.mxu0 0.0
  %405 = vmatprep.subr.mxu0 0.0
  %406 = vmatpush1.msra.mxu0 0.0
  %407 = vmatprep.subr.mxu0 0.0
  %408 = vmatpush1.msra.mxu0 0.0
  %409 = vmatprep.subr.mxu0 0.0
  %410 = vmatpush1.msra.mxu0 0.0
  %411 = vmatprep.subr.mxu0 0.0
  %412 = vmatpush1.msra.mxu0 0.0
  %413 = vmatprep.subr.mxu0 0.0
  %414 = vmatpush1.msra.mxu0 0.0
  %415 = vmatprep.subr.mxu0 0.0
  %416 = vmatpush1.msra.mxu0 0.0
  %417 = vmatprep.subr.mxu0 0.0
  %418 = vmatpush1.msra.mxu0 0.0
  %419 = vmatprep.subr.mxu0 0.0
  %420 = vmatpush1.msra.mxu0 0.0
  %421 = vmatprep.subr.mxu0 0.0
  %422 = vmatpush1.msra.mxu0 0.0
  %423 = vmatprep.subr.mxu0 0.0
  %424 = vmatpush1.msra.mxu0 0.0
  %425 = vmatprep.subr.mxu0 0.0
  %426 = vmatpush1.msra.mxu0 0.0
  %427 = vmatprep.subr.mxu0 0.0
  %428 = vmatpush1.msra.mxu0 0.0
  %429 = vmatprep.subr.mxu0 0.0
  %430 = vmatpush1.msra.mxu0 0.0
  %431 = vmatprep.subr.mxu0 0.0
  %432 = vmatpush1.msra.mxu0 0.0
  %433 = vmatprep.subr.mxu0 0.0
  %434 = vmatpush1.msra.mxu0 0.0
  %435 = vmatprep.mubr.f32.mxu0 0.0
  %436 = vmatmul.mubr.f32.gmra.mrb[0].mxu0 %v350
  %v437 = vpop.f32.mrb[0].mxu0
  %v438 = vadd.f32 0.0, %v437
  %v439 = vpop.f32.mrb[0].mxu0
  %440 = vdwg.mxu0
  %v441 = vadd.f32 %v354, %v438
  %v442 = vmax.f32 %v441, 0.0
  %s443 = scalar_lea.vmem %s5, 16
  %444 = vst [vmem:[%s443] sm:$0xff] %v442
  %s445 = scalar_lea.vmem [#allocation3], 24
  %v446 = vld [vmem:[%s445] sm:$0xff]
  %v447 = vld [vmem:[%s2] sm:$0xff]
  %v448 = vld [vmem:[%s2 + $0x8] sm:$0xff]
  %v449 = vld [vmem:[%s2 + $0x10] sm:$0xff]
  %v450 = vld [vmem:[%s2 + $0x18] sm:$0xff]
  %v451 = vld [vmem:[%s2 + $0x20] sm:$0xff]
  %v452 = vld [vmem:[%s2 + $0x28] sm:$0xff]
  %v453 = vld [vmem:[%s2 + $0x30] sm:$0xff]
  %v454 = vld [vmem:[%s2 + $0x38] sm:$0xff]
  %v455 = vld [vmem:[%s2 + $0x40] sm:$0xff]
  %v456 = vld [vmem:[%s2 + $0x48] sm:$0xff]
  %v457 = vld [vmem:[%s2 + $0x50] sm:$0xff]
  %v458 = vld [vmem:[%s2 + $0x58] sm:$0xff]
  %v459 = vld [vmem:[%s2 + $0x60] sm:$0xff]
  %v460 = vld [vmem:[%s2 + $0x68] sm:$0xff]
  %v461 = vld [vmem:[%s2 + $0x70] sm:$0xff]
  %v462 = vld [vmem:[%s2 + $0x78] sm:$0xff]
  %463 = vmatprep.subr.mxu0 0.0
  %464 = vmatpush1.msra.mxu0 %v447
  %465 = vmatprep.subr.mxu0 0.0
  %466 = vmatpush1.msra.mxu0 %v448
  %467 = vmatprep.subr.mxu0 0.0
  %468 = vmatpush1.msra.mxu0 %v449
  %469 = vmatprep.subr.mxu0 0.0
  %470 = vmatpush1.msra.mxu0 %v450
  %471 = vmatprep.subr.mxu0 0.0
  %472 = vmatpush1.msra.mxu0 %v451
  %473 = vmatprep.subr.mxu0 0.0
  %474 = vmatpush1.msra.mxu0 %v452
  %475 = vmatprep.subr.mxu0 0.0
  %476 = vmatpush1.msra.mxu0 %v453
  %477 = vmatprep.subr.mxu0 0.0
  %478 = vmatpush1.msra.mxu0 %v454
  %479 = vmatprep.subr.mxu0 0.0
  %480 = vmatpush1.msra.mxu0 %v455
  %481 = vmatprep.subr.mxu0 0.0
  %482 = vmatpush1.msra.mxu0 %v456
  %483 = vmatprep.subr.mxu0 0.0
  %484 = vmatpush1.msra.mxu0 %v457
  %485 = vmatprep.subr.mxu0 0.0
  %486 = vmatpush1.msra.mxu0 %v458
  %487 = vmatprep.subr.mxu0 0.0
  %488 = vmatpush1.msra.mxu0 %v459
  %489 = vmatprep.subr.mxu0 0.0
  %490 = vmatpush1.msra.mxu0 %v460
  %491 = vmatprep.subr.mxu0 0.0
  %492 = vmatpush1.msra.mxu0 %v461
  %493 = vmatprep.subr.mxu0 0.0
  %494 = vmatpush1.msra.mxu0 %v462
  %495 = vmatprep.subr.mxu0 0.0
  %496 = vmatpush1.msra.mxu0 0.0
  %497 = vmatprep.subr.mxu0 0.0
  %498 = vmatpush1.msra.mxu0 0.0
  %499 = vmatprep.subr.mxu0 0.0
  %500 = vmatpush1.msra.mxu0 0.0
  %501 = vmatprep.subr.mxu0 0.0
  %502 = vmatpush1.msra.mxu0 0.0
  %503 = vmatprep.subr.mxu0 0.0
  %504 = vmatpush1.msra.mxu0 0.0
  %505 = vmatprep.subr.mxu0 0.0
  %506 = vmatpush1.msra.mxu0 0.0
  %507 = vmatprep.subr.mxu0 0.0
  %508 = vmatpush1.msra.mxu0 0.0
  %509 = vmatprep.subr.mxu0 0.0
  %510 = vmatpush1.msra.mxu0 0.0
  %511 = vmatprep.subr.mxu0 0.0
  %512 = vmatpush1.msra.mxu0 0.0
  %513 = vmatprep.subr.mxu0 0.0
  %514 = vmatpush1.msra.mxu0 0.0
  %515 = vmatprep.subr.mxu0 0.0
  %516 = vmatpush1.msra.mxu0 0.0
  %517 = vmatprep.subr.mxu0 0.0
  %518 = vmatpush1.msra.mxu0 0.0
  %519 = vmatprep.subr.mxu0 0.0
  %520 = vmatpush1.msra.mxu0 0.0
  %521 = vmatprep.subr.mxu0 0.0
  %522 = vmatpush1.msra.mxu0 0.0
  %523 = vmatprep.subr.mxu0 0.0
  %524 = vmatpush1.msra.mxu0 0.0
  %525 = vmatprep.subr.mxu0 0.0
  %526 = vmatpush1.msra.mxu0 0.0
  %527 = vmatprep.mubr.f32.mxu0 0.0
  %528 = vmatmul.mubr.f32.gmra.mrb[0].mxu0 %v442
  %v529 = vpop.f32.mrb[0].mxu0
  %v530 = vadd.f32 0.0, %v529
  %v531 = vpop.f32.mrb[0].mxu0
  %532 = vdwg.mxu0
  %v533 = vadd.f32 %v446, %v530
  %v534 = vmax.f32 %v533, 0.0
  %s535 = scalar_lea.vmem %s5, 24
  %536 = vst [vmem:[%s535] sm:$0xff] %v534
  %s537 = scalar_lea.vmem [#allocation3], 32
  %v538 = vld [vmem:[%s537] sm:$0xff]
  %v539 = vld [vmem:[%s2] sm:$0xff]
  %v540 = vld [vmem:[%s2 + $0x8] sm:$0xff]
  %v541 = vld [vmem:[%s2 + $0x10] sm:$0xff]
  %v542 = vld [vmem:[%s2 + $0x18] sm:$0xff]
  %v543 = vld [vmem:[%s2 + $0x20] sm:$0xff]
  %v544 = vld [vmem:[%s2 + $0x28] sm:$0xff]
  %v545 = vld [vmem:[%s2 + $0x30] sm:$0xff]
  %v546 = vld [vmem:[%s2 + $0x38] sm:$0xff]
  %v547 = vld [vmem:[%s2 + $0x40] sm:$0xff]
  %v548 = vld [vmem:[%s2 + $0x48] sm:$0xff]
  %v549 = vld [vmem:[%s2 + $0x50] sm:$0xff]
  %v550 = vld [vmem:[%s2 + $0x58] sm:$0xff]
  %v551 = vld [vmem:[%s2 + $0x60] sm:$0xff]
  %v552 = vld [vmem:[%s2 + $0x68] sm:$0xff]
  %v553 = vld [vmem:[%s2 + $0x70] sm:$0xff]
  %v554 = vld [vmem:[%s2 + $0x78] sm:$0xff]
  %555 = vmatprep.subr.mxu0 0.0
  %556 = vmatpush1.msra.mxu0 %v539
  %557 = vmatprep.subr.mxu0 0.0
  %558 = vmatpush1.msra.mxu0 %v540
  %559 = vmatprep.subr.mxu0 0.0
  %560 = vmatpush1.msra.mxu0 %v541
  %561 = vmatprep.subr.mxu0 0.0
  %562 = vmatpush1.msra.mxu0 %v542
  %563 = vmatprep.subr.mxu0 0.0
  %564 = vmatpush1.msra.mxu0 %v543
  %565 = vmatprep.subr.mxu0 0.0
  %566 = vmatpush1.msra.mxu0 %v544
  %567 = vmatprep.subr.mxu0 0.0
  %568 = vmatpush1.msra.mxu0 %v545
  %569 = vmatprep.subr.mxu0 0.0
  %570 = vmatpush1.msra.mxu0 %v546
  %571 = vmatprep.subr.mxu0 0.0
  %572 = vmatpush1.msra.mxu0 %v547
  %573 = vmatprep.subr.mxu0 0.0
  %574 = vmatpush1.msra.mxu0 %v548
  %575 = vmatprep.subr.mxu0 0.0
  %576 = vmatpush1.msra.mxu0 %v549
  %577 = vmatprep.subr.mxu0 0.0
  %578 = vmatpush1.msra.mxu0 %v550
  %579 = vmatprep.subr.mxu0 0.0
  %580 = vmatpush1.msra.mxu0 %v551
  %581 = vmatprep.subr.mxu0 0.0
  %582 = vmatpush1.msra.mxu0 %v552
  %583 = vmatprep.subr.mxu0 0.0
  %584 = vmatpush1.msra.mxu0 %v553
  %585 = vmatprep.subr.mxu0 0.0
  %586 = vmatpush1.msra.mxu0 %v554
  %587 = vmatprep.subr.mxu0 0.0
  %588 = vmatpush1.msra.mxu0 0.0
  %589 = vmatprep.subr.mxu0 0.0
  %590 = vmatpush1.msra.mxu0 0.0
  %591 = vmatprep.subr.mxu0 0.0
  %592 = vmatpush1.msra.mxu0 0.0
  %593 = vmatprep.subr.mxu0 0.0
  %594 = vmatpush1.msra.mxu0 0.0
  %595 = vmatprep.subr.mxu0 0.0
  %596 = vmatpush1.msra.mxu0 0.0
  %597 = vmatprep.subr.mxu0 0.0
  %598 = vmatpush1.msra.mxu0 0.0
  %599 = vmatprep.subr.mxu0 0.0
  %600 = vmatpush1.msra.mxu0 0.0
  %601 = vmatprep.subr.mxu0 0.0
  %602 = vmatpush1.msra.mxu0 0.0
  %603 = vmatprep.subr.mxu0 0.0
  %604 = vmatpush1.msra.mxu0 0.0
  %605 = vmatprep.subr.mxu0 0.0
  %606 = vmatpush1.msra.mxu0 0.0
  %607 = vmatprep.subr.mxu0 0.0
  %608 = vmatpush1.msra.mxu0 0.0
  %609 = vmatprep.subr.mxu0 0.0
  %610 = vmatpush1.msra.mxu0 0.0
  %611 = vmatprep.subr.mxu0 0.0
  %612 = vmatpush1.msra.mxu0 0.0
  %613 = vmatprep.subr.mxu0 0.0
  %614 = vmatpush1.msra.mxu0 0.0
  %615 = vmatprep.subr.mxu0 0.0
  %616 = vmatpush1.msra.mxu0 0.0
  %617 = vmatprep.subr.mxu0 0.0
  %618 = vmatpush1.msra.mxu0 0.0
  %619 = vmatprep.mubr.f32.mxu0 0.0
  %620 = vmatmul.mubr.f32.gmra.mrb[0].mxu0 %v534
  %v621 = vpop.f32.mrb[0].mxu0
  %v622 = vadd.f32 0.0, %v621
  %v623 = vpop.f32.mrb[0].mxu0
  %624 = vdwg.mxu0
  %v625 = vadd.f32 %v538, %v622
  %v626 = vmax.f32 %v625, 0.0
  %s627 = scalar_lea.vmem %s5, 32
  %628 = vst [vmem:[%s627] sm:$0xff] %v626
  %s629 = scalar_lea.vmem [#allocation3], 40
  %v630 = vld [vmem:[%s629] sm:$0xff]
  %v631 = vld [vmem:[%s2] sm:$0xff]
  %v632 = vld [vmem:[%s2 + $0x8] sm:$0xff]
  %v633 = vld [vmem:[%s2 + $0x10] sm:$0xff]
  %v634 = vld [vmem:[%s2 + $0x18] sm:$0xff]
  %v635 = vld [vmem:[%s2 + $0x20] sm:$0xff]
  %v636 = vld [vmem:[%s2 + $0x28] sm:$0xff]
  %v637 = vld [vmem:[%s2 + $0x30] sm:$0xff]
  %v638 = vld [vmem:[%s2 + $0x38] sm:$0xff]
  %v639 = vld [vmem:[%s2 + $0x40] sm:$0xff]
  %v640 = vld [vmem:[%s2 + $0x48] sm:$0xff]
  %v641 = vld [vmem:[%s2 + $0x50] sm:$0xff]
  %v642 = vld [vmem:[%s2 + $0x58] sm:$0xff]
  %v643 = vld [vmem:[%s2 + $0x60] sm:$0xff]
  %v644 = vld [vmem:[%s2 + $0x68] sm:$0xff]
  %v645 = vld [vmem:[%s2 + $0x70] sm:$0xff]
  %v646 = vld [vmem:[%s2 + $0x78] sm:$0xff]
  %647 = vmatprep.subr.mxu0 0.0
  %648 = vmatpush1.msra.mxu0 %v631
  %649 = vmatprep.subr.mxu0 0.0
  %650 = vmatpush1.msra.mxu0 %v632
  %651 = vmatprep.subr.mxu0 0.0
  %652 = vmatpush1.msra.mxu0 %v633
  %653 = vmatprep.subr.mxu0 0.0
  %654 = vmatpush1.msra.mxu0 %v634
  %655 = vmatprep.subr.mxu0 0.0
  %656 = vmatpush1.msra.mxu0 %v635
  %657 = vmatprep.subr.mxu0 0.0
  %658 = vmatpush1.msra.mxu0 %v636
  %659 = vmatprep.subr.mxu0 0.0
  %660 = vmatpush1.msra.mxu0 %v637
  %661 = vmatprep.subr.mxu0 0.0
  %662 = vmatpush1.msra.mxu0 %v638
  %663 = vmatprep.subr.mxu0 0.0
  %664 = vmatpush1.msra.mxu0 %v639
  %665 = vmatprep.subr.mxu0 0.0
  %666 = vmatpush1.msra.mxu0 %v640
  %667 = vmatprep.subr.mxu0 0.0
  %668 = vmatpush1.msra.mxu0 %v641
  %669 = vmatprep.subr.mxu0 0.0
  %670 = vmatpush1.msra.mxu0 %v642
  %671 = vmatprep.subr.mxu0 0.0
  %672 = vmatpush1.msra.mxu0 %v643
  %673 = vmatprep.subr.mxu0 0.0
  %674 = vmatpush1.msra.mxu0 %v644
  %675 = vmatprep.subr.mxu0 0.0
  %676 = vmatpush1.msra.mxu0 %v645
  %677 = vmatprep.subr.mxu0 0.0
  %678 = vmatpush1.msra.mxu0 %v646
  %679 = vmatprep.subr.mxu0 0.0
  %680 = vmatpush1.msra.mxu0 0.0
  %681 = vmatprep.subr.mxu0 0.0
  %682 = vmatpush1.msra.mxu0 0.0
  %683 = vmatprep.subr.mxu0 0.0
  %684 = vmatpush1.msra.mxu0 0.0
  %685 = vmatprep.subr.mxu0 0.0
  %686 = vmatpush1.msra.mxu0 0.0
  %687 = vmatprep.subr.mxu0 0.0
  %688 = vmatpush1.msra.mxu0 0.0
  %689 = vmatprep.subr.mxu0 0.0
  %690 = vmatpush1.msra.mxu0 0.0
  %691 = vmatprep.subr.mxu0 0.0
  %692 = vmatpush1.msra.mxu0 0.0
  %693 = vmatprep.subr.mxu0 0.0
  %694 = vmatpush1.msra.mxu0 0.0
  %695 = vmatprep.subr.mxu0 0.0
  %696 = vmatpush1.msra.mxu0 0.0
  %697 = vmatprep.subr.mxu0 0.0
  %698 = vmatpush1.msra.mxu0 0.0
  %699 = vmatprep.subr.mxu0 0.0
  %700 = vmatpush1.msra.mxu0 0.0
  %701 = vmatprep.subr.mxu0 0.0
  %702 = vmatpush1.msra.mxu0 0.0
  %703 = vmatprep.subr.mxu0 0.0
  %704 = vmatpush1.msra.mxu0 0.0
  %705 = vmatprep.subr.mxu0 0.0
  %706 = vmatpush1.msra.mxu0 0.0
  %707 = vmatprep.subr.mxu0 0.0
  %708 = vmatpush1.msra.mxu0 0.0
  %709 = vmatprep.subr.mxu0 0.0
  %710 = vmatpush1.msra.mxu0 0.0
  %711 = vmatprep.mubr.f32.mxu0 0.0
  %712 = vmatmul.mubr.f32.gmra.mrb[0].mxu0 %v626
  %v713 = vpop.f32.mrb[0].mxu0
  %v714 = vadd.f32 0.0, %v713
  %v715 = vpop.f32.mrb[0].mxu0
  %716 = vdwg.mxu0
  %v717 = vadd.f32 %v630, %v714
  %v718 = vmax.f32 %v717, 0.0
  %s719 = scalar_lea.vmem %s5, 40
  %720 = vst [vmem:[%s719] sm:$0xff] %v718
  %s721 = scalar_lea.vmem [#allocation3], 48
  %v722 = vld [vmem:[%s721] sm:$0xff]
  %v723 = vld [vmem:[%s2] sm:$0xff]
  %v724 = vld [vmem:[%s2 + $0x8] sm:$0xff]
  %v725 = vld [vmem:[%s2 + $0x10] sm:$0xff]
  %v726 = vld [vmem:[%s2 + $0x18] sm:$0xff]
  %v727 = vld [vmem:[%s2 + $0x20] sm:$0xff]
  %v728 = vld [vmem:[%s2 + $0x28] sm:$0xff]
  %v729 = vld [vmem:[%s2 + $0x30] sm:$0xff]
  %v730 = vld [vmem:[%s2 + $0x38] sm:$0xff]
  %v731 = vld [vmem:[%s2 + $0x40] sm:$0xff]
  %v732 = vld [vmem:[%s2 + $0x48] sm:$0xff]
  %v733 = vld [vmem:[%s2 + $0x50] sm:$0xff]
  %v734 = vld [vmem:[%s2 + $0x58] sm:$0xff]
  %v735 = vld [vmem:[%s2 + $0x60] sm:$0xff]
  %v736 = vld [vmem:[%s2 + $0x68] sm:$0xff]
  %v737 = vld [vmem:[%s2 + $0x70] sm:$0xff]
  %v738 = vld [vmem:[%s2 + $0x78] sm:$0xff]
  %739 = vmatprep.subr.mxu0 0.0
  %740 = vmatpush1.msra.mxu0 %v723
  %741 = vmatprep.subr.mxu0 0.0
  %742 = vmatpush1.msra.mxu0 %v724
  %743 = vmatprep.subr.mxu0 0.0
  %744 = vmatpush1.msra.mxu0 %v725
  %745 = vmatprep.subr.mxu0 0.0
  %746 = vmatpush1.msra.mxu0 %v726
  %747 = vmatprep.subr.mxu0 0.0
  %748 = vmatpush1.msra.mxu0 %v727
  %749 = vmatprep.subr.mxu0 0.0
  %750 = vmatpush1.msra.mxu0 %v728
  %751 = vmatprep.subr.mxu0 0.0
  %752 = vmatpush1.msra.mxu0 %v729
  %753 = vmatprep.subr.mxu0 0.0
  %754 = vmatpush1.msra.mxu0 %v730
  %755 = vmatprep.subr.mxu0 0.0
  %756 = vmatpush1.msra.mxu0 %v731
  %757 = vmatprep.subr.mxu0 0.0
  %758 = vmatpush1.msra.mxu0 %v732
  %759 = vmatprep.subr.mxu0 0.0
  %760 = vmatpush1.msra.mxu0 %v733
  %761 = vmatprep.subr.mxu0 0.0
  %762 = vmatpush1.msra.mxu0 %v734
  %763 = vmatprep.subr.mxu0 0.0
  %764 = vmatpush1.msra.mxu0 %v735
  %765 = vmatprep.subr.mxu0 0.0
  %766 = vmatpush1.msra.mxu0 %v736
  %767 = vmatprep.subr.mxu0 0.0
  %768 = vmatpush1.msra.mxu0 %v737
  %769 = vmatprep.subr.mxu0 0.0
  %770 = vmatpush1.msra.mxu0 %v738
  %771 = vmatprep.subr.mxu0 0.0
  %772 = vmatpush1.msra.mxu0 0.0
  %773 = vmatprep.subr.mxu0 0.0
  %774 = vmatpush1.msra.mxu0 0.0
  %775 = vmatprep.subr.mxu0 0.0
  %776 = vmatpush1.msra.mxu0 0.0
  %777 = vmatprep.subr.mxu0 0.0
  %778 = vmatpush1.msra.mxu0 0.0
  %779 = vmatprep.subr.mxu0 0.0
  %780 = vmatpush1.msra.mxu0 0.0
  %781 = vmatprep.subr.mxu0 0.0
  %782 = vmatpush1.msra.mxu0 0.0
  %783 = vmatprep.subr.mxu0 0.0
  %784 = vmatpush1.msra.mxu0 0.0
  %785 = vmatprep.subr.mxu0 0.0
  %786 = vmatpush1.msra.mxu0 0.0
  %787 = vmatprep.subr.mxu0 0.0
  %788 = vmatpush1.msra.mxu0 0.0
  %789 = vmatprep.subr.mxu0 0.0
  %790 = vmatpush1.msra.mxu0 0.0
  %791 = vmatprep.subr.mxu0 0.0
  %792 = vmatpush1.msra.mxu0 0.0
  %793 = vmatprep.subr.mxu0 0.0
  %794 = vmatpush1.msra.mxu0 0.0
  %795 = vmatprep.subr.mxu0 0.0
  %796 = vmatpush1.msra.mxu0 0.0
  %797 = vmatprep.subr.mxu0 0.0
  %798 = vmatpush1.msra.mxu0 0.0
  %799 = vmatprep.subr.mxu0 0.0
  %800 = vmatpush1.msra.mxu0 0.0
  %801 = vmatprep.subr.mxu0 0.0
  %802 = vmatpush1.msra.mxu0 0.0
  %803 = vmatprep.mubr.f32.mxu0 0.0
  %804 = vmatmul.mubr.f32.gmra.mrb[0].mxu0 %v718
  %v805 = vpop.f32.mrb[0].mxu0
  %v806 = vadd.f32 0.0, %v805
  %v807 = vpop.f32.mrb[0].mxu0
  %808 = vdwg.mxu0
  %v809 = vadd.f32 %v722, %v806
  %v810 = vmax.f32 %v809, 0.0
  %s811 = scalar_lea.vmem %s5, 48
  %812 = vst [vmem:[%s811] sm:$0xff] %v810
  %s813 = scalar_lea.vmem [#allocation3], 56
  %v814 = vld [vmem:[%s813] sm:$0xff]
  %v815 = vld [vmem:[%s2] sm:$0xff]
  %v816 = vld [vmem:[%s2 + $0x8] sm:$0xff]
  %v817 = vld [vmem:[%s2 + $0x10] sm:$0xff]
  %v818 = vld [vmem:[%s2 + $0x18] sm:$0xff]
  %v819 = vld [vmem:[%s2 + $0x20] sm:$0xff]
  %v820 = vld [vmem:[%s2 + $0x28] sm:$0xff]
  %v821 = vld [vmem:[%s2 + $0x30] sm:$0xff]
  %v822 = vld [vmem:[%s2 + $0x38] sm:$0xff]
  %v823 = vld [vmem:[%s2 + $0x40] sm:$0xff]
  %v824 = vld [vmem:[%s2 + $0x48] sm:$0xff]
  %v825 = vld [vmem:[%s2 + $0x50] sm:$0xff]
  %v826 = vld [vmem:[%s2 + $0x58] sm:$0xff]
  %v827 = vld [vmem:[%s2 + $0x60] sm:$0xff]
  %v828 = vld [vmem:[%s2 + $0x68] sm:$0xff]
  %v829 = vld [vmem:[%s2 + $0x70] sm:$0xff]
  %v830 = vld [vmem:[%s2 + $0x78] sm:$0xff]
  %831 = vmatprep.subr.mxu0 0.0
  %832 = vmatpush1.msra.mxu0 %v815
  %833 = vmatprep.subr.mxu0 0.0
  %834 = vmatpush1.msra.mxu0 %v816
  %835 = vmatprep.subr.mxu0 0.0
  %836 = vmatpush1.msra.mxu0 %v817
  %837 = vmatprep.subr.mxu0 0.0
  %838 = vmatpush1.msra.mxu0 %v818
  %839 = vmatprep.subr.mxu0 0.0
  %840 = vmatpush1.msra.mxu0 %v819
  %841 = vmatprep.subr.mxu0 0.0
  %842 = vmatpush1.msra.mxu0 %v820
  %843 = vmatprep.subr.mxu0 0.0
  %844 = vmatpush1.msra.mxu0 %v821
  %845 = vmatprep.subr.mxu0 0.0
  %846 = vmatpush1.msra.mxu0 %v822
  %847 = vmatprep.subr.mxu0 0.0
  %848 = vmatpush1.msra.mxu0 %v823
  %849 = vmatprep.subr.mxu0 0.0
  %850 = vmatpush1.msra.mxu0 %v824
  %851 = vmatprep.subr.mxu0 0.0
  %852 = vmatpush1.msra.mxu0 %v825
  %853 = vmatprep.subr.mxu0 0.0
  %854 = vmatpush1.msra.mxu0 %v826
  %855 = vmatprep.subr.mxu0 0.0
  %856 = vmatpush1.msra.mxu0 %v827
  %857 = vmatprep.subr.mxu0 0.0
  %858 = vmatpush1.msra.mxu0 %v828
  %859 = vmatprep.subr.mxu0 0.0
  %860 = vmatpush1.msra.mxu0 %v829
  %861 = vmatprep.subr.mxu0 0.0
  %862 = vmatpush1.msra.mxu0 %v830
  %863 = vmatprep.subr.mxu0 0.0
  %864 = vmatpush1.msra.mxu0 0.0
  %865 = vmatprep.subr.mxu0 0.0
  %866 = vmatpush1.msra.mxu0 0.0
  %867 = vmatprep.subr.mxu0 0.0
  %868 = vmatpush1.msra.mxu0 0.0
  %869 = vmatprep.subr.mxu0 0.0
  %870 = vmatpush1.msra.mxu0 0.0
  %871 = vmatprep.subr.mxu0 0.0
  %872 = vmatpush1.msra.mxu0 0.0
  %873 = vmatprep.subr.mxu0 0.0
  %874 = vmatpush1.msra.mxu0 0.0
  %875 = vmatprep.subr.mxu0 0.0
  %876 = vmatpush1.msra.mxu0 0.0
  %877 = vmatprep.subr.mxu0 0.0
  %878 = vmatpush1.msra.mxu0 0.0
  %879 = vmatprep.subr.mxu0 0.0
  %880 = vmatpush1.msra.mxu0 0.0
  %881 = vmatprep.subr.mxu0 0.0
  %882 = vmatpush1.msra.mxu0 0.0
  %883 = vmatprep.subr.mxu0 0.0
  %884 = vmatpush1.msra.mxu0 0.0
  %885 = vmatprep.subr.mxu0 0.0
  %886 = vmatpush1.msra.mxu0 0.0
  %887 = vmatprep.subr.mxu0 0.0
  %888 = vmatpush1.msra.mxu0 0.0
  %889 = vmatprep.subr.mxu0 0.0
  %890 = vmatpush1.msra.mxu0 0.0
  %891 = vmatprep.subr.mxu0 0.0
  %892 = vmatpush1.msra.mxu0 0.0
  %893 = vmatprep.subr.mxu0 0.0
  %894 = vmatpush1.msra.mxu0 0.0
  %895 = vmatprep.mubr.f32.mxu0 0.0
  %896 = vmatmul.mubr.f32.gmra.mrb[0].mxu0 %v810
  %v897 = vpop.f32.mrb[0].mxu0
  %v898 = vadd.f32 0.0, %v897
  %v899 = vpop.f32.mrb[0].mxu0
  %900 = vdwg.mxu0
  %v901 = vadd.f32 %v814, %v898
  %v902 = vmax.f32 %v901, 0.0
  %s903 = scalar_lea.vmem %s5, 56
  %904 = vst [vmem:[%s903] sm:$0xff] %v902
  %905 = vst [vmem:[#allocation2] sm:$0xff] %v902
  // Predicated region
  $region26: #{rnn_forward.1} parent=0 // pred_check
    _
  $region27: #{rnn_forward.1} parent=0 // pred_check_branch
    %907 = sbr.rel (0) target = $region29
  $region28: #{rnn_forward.1} parent=0 // pred_region
    _
  $region29: #{rnn_forward.1} parent=0 // pred_fallthru
    _
  // Predicated region
  $region30: #{rnn_forward.1} parent=0 // pred_check
    _
  $region31: #{rnn_forward.1} parent=0 // pred_check_branch
    %909 = sbr.rel (0) target = $region33
  $region32: #{rnn_forward.1} parent=0 // pred_region
    _
  $region33: #{rnn_forward.1} parent=0 // pred_fallthru
    _

</llo_original>
